<compile_context>
chip_gen: v7x
topology: tpu7x:2x2x1
jax: 0.10.0
libtpu: 0.0.40
codegen_flags: <defaults>
</compile_context>

<pallas_src>
import functools

import jax
import jax.numpy as jnp
from jax.experimental import pallas as pl
from jax.experimental.pallas import tpu as pltpu


def _prefix_concat_kernel(spk_ref, w_ref, bias_ref, wte_hbm, out_hbm,
                          pf_vmem, dma_sems, *, prefix_len, copy_chunks):
    # spk_ref:  (B*P, E) f32 VMEM   speaker embeddings, pre-flattened in wrapper
    # w_ref:    (E, H)   f32 VMEM   linear weight (x @ W layout)
    # bias_ref: (1, H)   f32 VMEM   linear bias
    # wte_hbm:  (B, S, H) f32 HBM   just_wte (memory_space=pl.ANY, no auto-DMA)
    # out_hbm:  (B, P+S, H) f32 HBM output (memory_space=pl.ANY, written via DMA only)
    # pf_vmem:  (B, P, H) f32 VMEM  prefix staging buffer
    # dma_sems: DMA semaphores, one per wte chunk + one for the prefix copy
    P = prefix_len
    n_chunks = len(copy_chunks)

    # (1) Kick off the byte-dominant just_wte move as direct HBM->HBM DMAs into
    #     out[:, P:, :] — no VMEM round-trip, no per-grid-step pipeline overhead.
    #     Issued before the matmul so the DMA engines run under the MXU work.
    wte_copies = []
    for c, (start, size) in enumerate(copy_chunks):
        cp = pltpu.make_async_copy(
            wte_hbm.at[:, pl.ds(start, size), :],
            out_hbm.at[:, pl.ds(P + start, size), :],
            dma_sems.at[c],
        )
        cp.start()
        wte_copies.append(cp)

    # (2) Prefix rows: one collapsed (B*P, E) @ (E, H) f32 MXU matmul + bias,
    #     overlapped with the copies above. FLOPs are negligible vs the copy bytes.
    pf = jnp.dot(spk_ref[...], w_ref[...], preferred_element_type=jnp.float32)
    pf = pf + bias_ref[...]                    # (B*P, H) + (1, H) broadcast
    pf_vmem[...] = pf.reshape(pf_vmem.shape)   # sublane-only split, no lane movement

    # (3) Stage the prefix rows out to out[:, :P, :], then drain all DMAs.
    pf_cp = pltpu.make_async_copy(
        pf_vmem, out_hbm.at[:, pl.ds(0, P), :], dma_sems.at[n_chunks]
    )
    pf_cp.start()
    pf_cp.wait()
    for cp in wte_copies:
        cp.wait()


def prefix_net_forward(just_wte, speaker_id, emb_table, w, bias, *,
                       prefix_len, embed_size, n_copy_chunks=4):
    """just_wte: (B, S, H) f32, speaker_id: (B,) i32.

    Returns concat(prefix, just_wte) along the sequence axis: (B, P+S, H) f32,
    i.e. the inputs_embeds the PyTorch module feeds to GPT-Neo.
    """
    B, S, H = just_wte.shape
    P, E = prefix_len, embed_size

    # Glue: tiny embedding gather (B rows of P*E), flattened to (B*P, E) here so
    # the kernel does a single 2D MXU dot without an in-kernel batch reshape.
    spk = jnp.take(emb_table, speaker_id, axis=0).reshape(B * P, E).astype(jnp.float32)
    bias2d = bias.reshape(1, H).astype(jnp.float32)

    # Static chunking of the wte copy (a few large descriptors in flight).
    n_chunks = max(1, min(int(n_copy_chunks), S))
    bounds = [(i * S) // n_chunks for i in range(n_chunks + 1)]
    copy_chunks = tuple(
        (bounds[i], bounds[i + 1] - bounds[i])
        for i in range(n_chunks) if bounds[i + 1] > bounds[i]
    )

    kernel = functools.partial(
        _prefix_concat_kernel, prefix_len=P, copy_chunks=copy_chunks
    )

    out_bytes = B * (P + S) * H * 4
    in_bytes = B * S * H * 4 + B * P * E * 4 + E * H * 4 + H * 4

    return pl.pallas_call(
        kernel,
        out_shape=jax.ShapeDtypeStruct((B, P + S, H), just_wte.dtype),
        in_specs=[
            pl.BlockSpec(memory_space=pltpu.MemorySpace.VMEM),  # spk (B*P, E)
            pl.BlockSpec(memory_space=pltpu.MemorySpace.VMEM),  # w   (E, H)
            pl.BlockSpec(memory_space=pltpu.MemorySpace.VMEM),  # bias (1, H)
            pl.BlockSpec(memory_space=pl.ANY),                  # just_wte stays in HBM
        ],
        out_specs=pl.BlockSpec(memory_space=pl.ANY),            # output written via DMA
        scratch_shapes=[
            pltpu.VMEM((B, P, H), jnp.float32),                 # prefix staging
            pltpu.SemaphoreType.DMA((len(copy_chunks) + 1,)),   # wte chunks + prefix
        ],
        cost_estimate=pl.CostEstimate(
            flops=2 * B * P * E * H,
            transcendentals=0,
            bytes_accessed=in_bytes + out_bytes,                # memory-bound hint
        ),
    )(spk, w.astype(jnp.float32), bias2d, just_wte)


if __name__ == "__main__":
    # Small, shape-consistent config (cfg analogue):
    #   batch_size=2, prefix_len=8, embed_size_per_token=32,
    #   token_size(hidden)=128, speaker_size=4, wte seq len=8
    B, P, E, H, S, SPK = 2, 8, 32, 128, 8, 4

    key = jax.random.PRNGKey(0)
    k1, k2, k3, k4, k5 = jax.random.split(key, 5)

    # Deterministic parameter init (shapes from __init__):
    emb_table = jax.random.normal(k1, (SPK, P * E), dtype=jnp.float32)          # nn.Embedding weight
    w = jax.random.normal(k2, (E, H), dtype=jnp.float32) / jnp.sqrt(float(E))   # nn.Linear weight^T
    bias = jax.random.normal(k3, (H,), dtype=jnp.float32) * 0.01                # nn.Linear bias

    just_wte = jax.random.normal(k4, (B, S, H), dtype=jnp.float32)
    speaker_id = jax.random.randint(k5, (B,), 0, SPK, dtype=jnp.int32)

    out = prefix_net_forward(
        just_wte, speaker_id, emb_table, w, bias, prefix_len=P, embed_size=E
    )
    jax.block_until_ready(out)

    # Pure-JAX f32 reference (matches the PyTorch f32 nn.Linear semantics).
    spk_ref = jnp.take(emb_table, speaker_id, axis=0).reshape(B, P, E)
    prefix_ref = jnp.einsum(
        "bpe,eh->bph", spk_ref, w, preferred_element_type=jnp.float32
    ) + bias
    ref = jnp.concatenate([prefix_ref, just_wte], axis=1)

    assert out.shape == (B, P + S, H)
    max_err = float(jnp.max(jnp.abs(out - ref)))
    assert jnp.allclose(out, ref, atol=2e-3, rtol=2e-3), max_err

    print("KERNEL_OK")
</pallas_src>

<mosaic_0001>
module attributes {stable_mosaic.version = 11 : i64} {
  func.func @_prefix_concat_kernel(%arg0: memref<16x32xf32, #tpu.memory_space<vmem>>, %arg1: memref<32x128xf32, #tpu.memory_space<vmem>>, %arg2: memref<1x128xf32, #tpu.memory_space<vmem>>, %arg3: memref<2x8x128xf32, #tpu.memory_space<any>>, %arg4: memref<2x16x128xf32, #tpu.memory_space<any>>, %arg5: memref<2x8x128xf32, #tpu.memory_space<vmem>>, %arg6: memref<5x!tpu.dma_semaphore, #tpu.memory_space<semaphore_mem>>) attributes {dimension_semantics = [], scalar_prefetch = 0 : i64, scratch_operands = 2 : i64, tpu.core_type = #tpu.core_type<tc>} {
    %c0_i32 = arith.constant 0 : i32
    %c0_i32_0 = arith.constant 0 : i32
    %c0_i32_1 = arith.constant 0 : i32
    %c0_i32_2 = arith.constant 0 : i32
    %0 = tpu.memref_slice %arg3[%c0_i32_0, %c0_i32_1, %c0_i32_2] : memref<2x8x128xf32, #tpu.memory_space<any>> -> memref<2x2x128xf32, #tpu.memory_space<any>>
    %c0_i32_3 = arith.constant 0 : i32
    %c8_i32 = arith.constant 8 : i32
    %c0_i32_4 = arith.constant 0 : i32
    %1 = tpu.memref_slice %arg4[%c0_i32_3, %c8_i32, %c0_i32_4] : memref<2x16x128xf32, #tpu.memory_space<any>> -> memref<2x2x128xf32, #tpu.memory_space<any>>
    %2 = tpu.memref_slice %arg6[%c0_i32] : memref<5x!tpu.dma_semaphore, #tpu.memory_space<semaphore_mem>> -> memref<1x!tpu.dma_semaphore, #tpu.memory_space<semaphore_mem>>
    %3 = tpu.memref_squeeze %2 : memref<1x!tpu.dma_semaphore, #tpu.memory_space<semaphore_mem>> -> memref<!tpu.dma_semaphore, #tpu.memory_space<semaphore_mem>>
    tpu.enqueue_dma source(%0 : memref<2x2x128xf32, #tpu.memory_space<any>>) target(%1 : memref<2x2x128xf32, #tpu.memory_space<any>>) target_semaphore(%3 : memref<!tpu.dma_semaphore, #tpu.memory_space<semaphore_mem>>)
    %c1_i32 = arith.constant 1 : i32
    %c0_i32_5 = arith.constant 0 : i32
    %c2_i32 = arith.constant 2 : i32
    %c0_i32_6 = arith.constant 0 : i32
    %4 = tpu.memref_slice %arg3[%c0_i32_5, %c2_i32, %c0_i32_6] : memref<2x8x128xf32, #tpu.memory_space<any>> -> memref<2x2x128xf32, #tpu.memory_space<any>>
    %c0_i32_7 = arith.constant 0 : i32
    %c10_i32 = arith.constant 10 : i32
    %c0_i32_8 = arith.constant 0 : i32
    %5 = tpu.memref_slice %arg4[%c0_i32_7, %c10_i32, %c0_i32_8] : memref<2x16x128xf32, #tpu.memory_space<any>> -> memref<2x2x128xf32, #tpu.memory_space<any>>
    %6 = tpu.memref_slice %arg6[%c1_i32] : memref<5x!tpu.dma_semaphore, #tpu.memory_space<semaphore_mem>> -> memref<1x!tpu.dma_semaphore, #tpu.memory_space<semaphore_mem>>
    %7 = tpu.memref_squeeze %6 : memref<1x!tpu.dma_semaphore, #tpu.memory_space<semaphore_mem>> -> memref<!tpu.dma_semaphore, #tpu.memory_space<semaphore_mem>>
    tpu.enqueue_dma source(%4 : memref<2x2x128xf32, #tpu.memory_space<any>>) target(%5 : memref<2x2x128xf32, #tpu.memory_space<any>>) target_semaphore(%7 : memref<!tpu.dma_semaphore, #tpu.memory_space<semaphore_mem>>)
    %c2_i32_9 = arith.constant 2 : i32
    %c0_i32_10 = arith.constant 0 : i32
    %c4_i32 = arith.constant 4 : i32
    %c0_i32_11 = arith.constant 0 : i32
    %8 = tpu.memref_slice %arg3[%c0_i32_10, %c4_i32, %c0_i32_11] : memref<2x8x128xf32, #tpu.memory_space<any>> -> memref<2x2x128xf32, #tpu.memory_space<any>>
    %c0_i32_12 = arith.constant 0 : i32
    %c12_i32 = arith.constant 12 : i32
    %c0_i32_13 = arith.constant 0 : i32
    %9 = tpu.memref_slice %arg4[%c0_i32_12, %c12_i32, %c0_i32_13] : memref<2x16x128xf32, #tpu.memory_space<any>> -> memref<2x2x128xf32, #tpu.memory_space<any>>
    %10 = tpu.memref_slice %arg6[%c2_i32_9] : memref<5x!tpu.dma_semaphore, #tpu.memory_space<semaphore_mem>> -> memref<1x!tpu.dma_semaphore, #tpu.memory_space<semaphore_mem>>
    %11 = tpu.memref_squeeze %10 : memref<1x!tpu.dma_semaphore, #tpu.memory_space<semaphore_mem>> -> memref<!tpu.dma_semaphore, #tpu.memory_space<semaphore_mem>>
    tpu.enqueue_dma source(%8 : memref<2x2x128xf32, #tpu.memory_space<any>>) target(%9 : memref<2x2x128xf32, #tpu.memory_space<any>>) target_semaphore(%11 : memref<!tpu.dma_semaphore, #tpu.memory_space<semaphore_mem>>)
    %c3_i32 = arith.constant 3 : i32
    %c0_i32_14 = arith.constant 0 : i32
    %c6_i32 = arith.constant 6 : i32
    %c0_i32_15 = arith.constant 0 : i32
    %12 = tpu.memref_slice %arg3[%c0_i32_14, %c6_i32, %c0_i32_15] : memref<2x8x128xf32, #tpu.memory_space<any>> -> memref<2x2x128xf32, #tpu.memory_space<any>>
    %c0_i32_16 = arith.constant 0 : i32
    %c14_i32 = arith.constant 14 : i32
    %c0_i32_17 = arith.constant 0 : i32
    %13 = tpu.memref_slice %arg4[%c0_i32_16, %c14_i32, %c0_i32_17] : memref<2x16x128xf32, #tpu.memory_space<any>> -> memref<2x2x128xf32, #tpu.memory_space<any>>
    %14 = tpu.memref_slice %arg6[%c3_i32] : memref<5x!tpu.dma_semaphore, #tpu.memory_space<semaphore_mem>> -> memref<1x!tpu.dma_semaphore, #tpu.memory_space<semaphore_mem>>
    %15 = tpu.memref_squeeze %14 : memref<1x!tpu.dma_semaphore, #tpu.memory_space<semaphore_mem>> -> memref<!tpu.dma_semaphore, #tpu.memory_space<semaphore_mem>>
    tpu.enqueue_dma source(%12 : memref<2x2x128xf32, #tpu.memory_space<any>>) target(%13 : memref<2x2x128xf32, #tpu.memory_space<any>>) target_semaphore(%15 : memref<!tpu.dma_semaphore, #tpu.memory_space<semaphore_mem>>)
    %c0 = arith.constant 0 : index
    %c0_18 = arith.constant 0 : index
    %16 = vector.load %arg0[%c0, %c0_18] : memref<16x32xf32, #tpu.memory_space<vmem>>, vector<16x32xf32>
    %c0_19 = arith.constant 0 : index
    %c0_20 = arith.constant 0 : index
    %17 = vector.load %arg1[%c0_19, %c0_20] : memref<32x128xf32, #tpu.memory_space<vmem>>, vector<32x128xf32>
    %cst = arith.constant dense<0.000000e+00> : vector<16x128xf32>
    %18 = tpu.matmul %16, %17, %cst {dimension_numbers = #tpu.dot_dimension_numbers<[1], [0], [0], [1], [0, 0, 1, 1], [], []>} : vector<16x32xf32>, vector<32x128xf32>, vector<16x128xf32> -> vector<16x128xf32>
    %c0_21 = arith.constant 0 : index
    %c0_22 = arith.constant 0 : index
    %19 = vector.load %arg2[%c0_21, %c0_22] : memref<1x128xf32, #tpu.memory_space<vmem>>, vector<1x128xf32>
    %20 = vector.broadcast %19 : vector<1x128xf32> to vector<16x128xf32>
    %21 = arith.addf %18, %20 : vector<16x128xf32>
    %22 = vector.shape_cast %21 : vector<16x128xf32> to vector<2x8x128xf32>
    %c0_23 = arith.constant 0 : index
    %c0_24 = arith.constant 0 : index
    %c0_25 = arith.constant 0 : index
    %23 = vector.load %arg5[%c0_23, %c0_24, %c0_25] : memref<2x8x128xf32, #tpu.memory_space<vmem>>, vector<2x8x128xf32>
    tpu.vector_store %arg5[%c0_23, %c0_24, %c0_25], %22 {strides = array<i32>} : memref<2x8x128xf32, #tpu.memory_space<vmem>>, vector<2x8x128xf32>,
    %c4_i32_26 = arith.constant 4 : i32
    %c0_i32_27 = arith.constant 0 : i32
    %c0_i32_28 = arith.constant 0 : i32
    %c0_i32_29 = arith.constant 0 : i32
    %24 = tpu.memref_slice %arg4[%c0_i32_27, %c0_i32_28, %c0_i32_29] : memref<2x16x128xf32, #tpu.memory_space<any>> -> memref<2x8x128xf32, #tpu.memory_space<any>>
    %25 = tpu.memref_slice %arg6[%c4_i32_26] : memref<5x!tpu.dma_semaphore, #tpu.memory_space<semaphore_mem>> -> memref<1x!tpu.dma_semaphore, #tpu.memory_space<semaphore_mem>>
    %26 = tpu.memref_squeeze %25 : memref<1x!tpu.dma_semaphore, #tpu.memory_space<semaphore_mem>> -> memref<!tpu.dma_semaphore, #tpu.memory_space<semaphore_mem>>
    tpu.enqueue_dma source(%arg5 : memref<2x8x128xf32, #tpu.memory_space<vmem>>) target(%24 : memref<2x8x128xf32, #tpu.memory_space<any>>) target_semaphore(%26 : memref<!tpu.dma_semaphore, #tpu.memory_space<semaphore_mem>>)
    %c4_i32_30 = arith.constant 4 : i32
    %c0_i32_31 = arith.constant 0 : i32
    %c0_i32_32 = arith.constant 0 : i32
    %c0_i32_33 = arith.constant 0 : i32
    %27 = tpu.memref_slice %arg4[%c0_i32_31, %c0_i32_32, %c0_i32_33] : memref<2x16x128xf32, #tpu.memory_space<any>> -> memref<2x8x128xf32, #tpu.memory_space<any>>
    %28 = tpu.memref_slice %arg6[%c4_i32_30] : memref<5x!tpu.dma_semaphore, #tpu.memory_space<semaphore_mem>> -> memref<1x!tpu.dma_semaphore, #tpu.memory_space<semaphore_mem>>
    %29 = tpu.memref_squeeze %28 : memref<1x!tpu.dma_semaphore, #tpu.memory_space<semaphore_mem>> -> memref<!tpu.dma_semaphore, #tpu.memory_space<semaphore_mem>>
    tpu.wait_dma2 semaphore(%29 : memref<!tpu.dma_semaphore, #tpu.memory_space<semaphore_mem>>) src(%arg5 : memref<2x8x128xf32, #tpu.memory_space<vmem>>) dst(%27 : memref<2x8x128xf32, #tpu.memory_space<any>>)
    %c0_i32_34 = arith.constant 0 : i32
    %c0_i32_35 = arith.constant 0 : i32
    %c0_i32_36 = arith.constant 0 : i32
    %c0_i32_37 = arith.constant 0 : i32
    %30 = tpu.memref_slice %arg3[%c0_i32_35, %c0_i32_36, %c0_i32_37] : memref<2x8x128xf32, #tpu.memory_space<any>> -> memref<2x2x128xf32, #tpu.memory_space<any>>
    %c0_i32_38 = arith.constant 0 : i32
    %c8_i32_39 = arith.constant 8 : i32
    %c0_i32_40 = arith.constant 0 : i32
    %31 = tpu.memref_slice %arg4[%c0_i32_38, %c8_i32_39, %c0_i32_40] : memref<2x16x128xf32, #tpu.memory_space<any>> -> memref<2x2x128xf32, #tpu.memory_space<any>>
    %32 = tpu.memref_slice %arg6[%c0_i32_34] : memref<5x!tpu.dma_semaphore, #tpu.memory_space<semaphore_mem>> -> memref<1x!tpu.dma_semaphore, #tpu.memory_space<semaphore_mem>>
    %33 = tpu.memref_squeeze %32 : memref<1x!tpu.dma_semaphore, #tpu.memory_space<semaphore_mem>> -> memref<!tpu.dma_semaphore, #tpu.memory_space<semaphore_mem>>
    tpu.wait_dma2 semaphore(%33 : memref<!tpu.dma_semaphore, #tpu.memory_space<semaphore_mem>>) src(%30 : memref<2x2x128xf32, #tpu.memory_space<any>>) dst(%31 : memref<2x2x128xf32, #tpu.memory_space<any>>)
    %c1_i32_41 = arith.constant 1 : i32
    %c0_i32_42 = arith.constant 0 : i32
    %c2_i32_43 = arith.constant 2 : i32
    %c0_i32_44 = arith.constant 0 : i32
    %34 = tpu.memref_slice %arg3[%c0_i32_42, %c2_i32_43, %c0_i32_44] : memref<2x8x128xf32, #tpu.memory_space<any>> -> memref<2x2x128xf32, #tpu.memory_space<any>>
    %c0_i32_45 = arith.constant 0 : i32
    %c10_i32_46 = arith.constant 10 : i32
    %c0_i32_47 = arith.constant 0 : i32
    %35 = tpu.memref_slice %arg4[%c0_i32_45, %c10_i32_46, %c0_i32_47] : memref<2x16x128xf32, #tpu.memory_space<any>> -> memref<2x2x128xf32, #tpu.memory_space<any>>
    %36 = tpu.memref_slice %arg6[%c1_i32_41] : memref<5x!tpu.dma_semaphore, #tpu.memory_space<semaphore_mem>> -> memref<1x!tpu.dma_semaphore, #tpu.memory_space<semaphore_mem>>
    %37 = tpu.memref_squeeze %36 : memref<1x!tpu.dma_semaphore, #tpu.memory_space<semaphore_mem>> -> memref<!tpu.dma_semaphore, #tpu.memory_space<semaphore_mem>>
    tpu.wait_dma2 semaphore(%37 : memref<!tpu.dma_semaphore, #tpu.memory_space<semaphore_mem>>) src(%34 : memref<2x2x128xf32, #tpu.memory_space<any>>) dst(%35 : memref<2x2x128xf32, #tpu.memory_space<any>>)
    %c2_i32_48 = arith.constant 2 : i32
    %c0_i32_49 = arith.constant 0 : i32
    %c4_i32_50 = arith.constant 4 : i32
    %c0_i32_51 = arith.constant 0 : i32
    %38 = tpu.memref_slice %arg3[%c0_i32_49, %c4_i32_50, %c0_i32_51] : memref<2x8x128xf32, #tpu.memory_space<any>> -> memref<2x2x128xf32, #tpu.memory_space<any>>
    %c0_i32_52 = arith.constant 0 : i32
    %c12_i32_53 = arith.constant 12 : i32
    %c0_i32_54 = arith.constant 0 : i32
    %39 = tpu.memref_slice %arg4[%c0_i32_52, %c12_i32_53, %c0_i32_54] : memref<2x16x128xf32, #tpu.memory_space<any>> -> memref<2x2x128xf32, #tpu.memory_space<any>>
    %40 = tpu.memref_slice %arg6[%c2_i32_48] : memref<5x!tpu.dma_semaphore, #tpu.memory_space<semaphore_mem>> -> memref<1x!tpu.dma_semaphore, #tpu.memory_space<semaphore_mem>>
    %41 = tpu.memref_squeeze %40 : memref<1x!tpu.dma_semaphore, #tpu.memory_space<semaphore_mem>> -> memref<!tpu.dma_semaphore, #tpu.memory_space<semaphore_mem>>
    tpu.wait_dma2 semaphore(%41 : memref<!tpu.dma_semaphore, #tpu.memory_space<semaphore_mem>>) src(%38 : memref<2x2x128xf32, #tpu.memory_space<any>>) dst(%39 : memref<2x2x128xf32, #tpu.memory_space<any>>)
    %c3_i32_55 = arith.constant 3 : i32
    %c0_i32_56 = arith.constant 0 : i32
    %c6_i32_57 = arith.constant 6 : i32
    %c0_i32_58 = arith.constant 0 : i32
    %42 = tpu.memref_slice %arg3[%c0_i32_56, %c6_i32_57, %c0_i32_58] : memref<2x8x128xf32, #tpu.memory_space<any>> -> memref<2x2x128xf32, #tpu.memory_space<any>>
    %c0_i32_59 = arith.constant 0 : i32
    %c14_i32_60 = arith.constant 14 : i32
    %c0_i32_61 = arith.constant 0 : i32
    %43 = tpu.memref_slice %arg4[%c0_i32_59, %c14_i32_60, %c0_i32_61] : memref<2x16x128xf32, #tpu.memory_space<any>> -> memref<2x2x128xf32, #tpu.memory_space<any>>
    %44 = tpu.memref_slice %arg6[%c3_i32_55] : memref<5x!tpu.dma_semaphore, #tpu.memory_space<semaphore_mem>> -> memref<1x!tpu.dma_semaphore, #tpu.memory_space<semaphore_mem>>
    %45 = tpu.memref_squeeze %44 : memref<1x!tpu.dma_semaphore, #tpu.memory_space<semaphore_mem>> -> memref<!tpu.dma_semaphore, #tpu.memory_space<semaphore_mem>>
    tpu.wait_dma2 semaphore(%45 : memref<!tpu.dma_semaphore, #tpu.memory_space<semaphore_mem>>) src(%42 : memref<2x2x128xf32, #tpu.memory_space<any>>) dst(%43 : memref<2x2x128xf32, #tpu.memory_space<any>>)
    return
  }
}

</mosaic_0001>

<llo_original>
// kernel: tpu_custom_call.1
$region0: #{tpu_custom_call.1}
  #allocation0 [shape = 'u32[]', space=smem, size = 0x4, offset = 0x4, fixed_abs, tag = 'smem constant byte address 0x4 - core index']
  #allocation1 [shape = 'u32[144,128]{1,0:T(1,128)}', space=vmem, size = 0x12000, scoped, tag = 'internal scratch']
  #allocation2 [shape = 'f32[2,8,128]{2,1,0:T(8,128)}', space=vmem, size = 0x2000, scoped, tag = 'scratch operand']
  #allocation3 [shape = 's32[5]{0}', space=sflag, size = 0x14, scoped, tag = 'scratch operand']
  #allocation8 [shape = 's32[]', space=sflag, size = 0x4, offset = 0, fixed_abs, tag = 'sflag constant byte address 0x0 - dummy sync flag']
  #allocation10 [shape = 's32[]', space=sflag, size = 0x4, offset = 0, fixed_abs, tag = 'sflag constant byte address 0x0 - dummy sync flag']
  #allocation12 [shape = 's32[]', space=sflag, size = 0x4, offset = 0, fixed_abs, tag = 'sflag constant byte address 0x0 - dummy sync flag']
  #allocation14 [shape = 's32[]', space=sflag, size = 0x4, offset = 0, fixed_abs, tag = 'sflag constant byte address 0x0 - dummy sync flag']
  #allocation16 [shape = 's32[]', space=sflag, size = 0x4, offset = 0, fixed_abs, tag = 'sflag constant byte address 0x0 - dummy sync flag']
  %s0 = inlined_call_operand.hbm [shape: f32[16,32], index: 0, kind: input, shape index: {}]
  %s1 = inlined_call_operand.hbm [shape: f32[32,128], index: 1, kind: input, shape index: {}]
  %s2 = inlined_call_operand.vmem [shape: f32[1,128], index: 2, kind: input, shape index: {}]
  %s3 = inlined_call_operand.hbm [shape: f32[2,8,128], index: 3, kind: input, shape index: {}]
  %s4 = inlined_call_operand.hbm [shape: f32[2,16,128], index: 4, kind: output, shape index: {}]
  %s5 = sld [smem:[#allocation0]]
  $region22: #{tpu_custom_call.1} parent=0
    _
  %s7 = ssub.s32 1, %s5
  %s8 = scalar_select 0, %s7, %s5
  $region1: #{tpu_custom_call.1} parent=0
    #allocation4 [shape = 'u8[8192]{0}', space=vmem, size = 0x2000, scoped, tag = 'input window, operand 0, single buffered']
    #allocation5 [shape = 's32[1]{0}', space=sflag, size = 0x4, scoped, tag = 'scoped memory for tpu_custom_call.1']
    #allocation6 [shape = 'u8[16384]{0}', space=vmem, size = 0x4000, scoped, tag = 'input window, operand 1, single buffered']
    #allocation7 [shape = 's32[1]{0}', space=sflag, size = 0x4, scoped, tag = 'scoped memory for tpu_custom_call.1']
    #allocation9 [shape = 'u32[3]{0}', space=smem, size = 0xc, scoped, tag = 'DMA stride descriptor']
    #allocation11 [shape = 'u32[3]{0}', space=smem, size = 0xc, scoped, tag = 'DMA stride descriptor']
    #allocation13 [shape = 'u32[3]{0}', space=smem, size = 0xc, scoped, tag = 'DMA stride descriptor']
    #allocation15 [shape = 'u32[3]{0}', space=smem, size = 0xc, scoped, tag = 'DMA stride descriptor']
    %9 = vsyncpa [#allocation5], 0
    %10 = vsyncpa [#allocation7], 0
    // Predicated region
    $region2: #{tpu_custom_call.1} parent=1 // pred_check
      _
    $region3: #{tpu_custom_call.1} parent=1 // pred_check_branch
      %12 = sbr.rel (0) target = $region5
    $region4: #{tpu_custom_call.1} parent=1 // pred_region
      %s14 = ssub.s32 256, 256
      %15 = vsyncadd [#allocation5], %s14
      %s16 = sshll.u32 [#allocation4], 4
      %s17 = int_to_ptr.vmem [resolvable:$true] %s16
      %22 = dma.hbm_to_vmem [thread:$0]  %s0, 256, %s17, [#allocation5], 128, 128, 8
    $region5: #{tpu_custom_call.1} parent=1 // pred_fallthru
      _
    // Predicated region
    $region6: #{tpu_custom_call.1} parent=1 // pred_check
      _
    $region7: #{tpu_custom_call.1} parent=1 // pred_check_branch
      %24 = sbr.rel (0) target = $region9
    $region8: #{tpu_custom_call.1} parent=1 // pred_region
      %s26 = ssub.s32 512, 512
      %27 = vsyncadd [#allocation7], %s26
      %s28 = sshll.u32 [#allocation6], 4
      %s29 = int_to_ptr.vmem [resolvable:$true] %s28
      %34 = dma.hbm_to_vmem [thread:$0]  %s1, 512, %s29, [#allocation7], 128, 128, 8
    $region9: #{tpu_custom_call.1} parent=1 // pred_fallthru
      _
    // Predicated region
    $region10: #{tpu_custom_call.1} parent=1 // pred_check
      _
    $region11: #{tpu_custom_call.1} parent=1 // pred_check_branch
      %36 = sbr.rel (0) target = $region13
    $region12: #{tpu_custom_call.1} parent=1 // pred_region
      _
    $region13: #{tpu_custom_call.1} parent=1 // pred_fallthru
      _
    // Predicated region
    $region14: #{tpu_custom_call.1} parent=1 // pred_check
      _
    $region15: #{tpu_custom_call.1} parent=1 // pred_check_branch
      %38 = sbr.rel (0) target = $region17
    $region16: #{tpu_custom_call.1} parent=1 // pred_region
      %39 = dma.done [#allocation5], 256
    $region17: #{tpu_custom_call.1} parent=1 // pred_fallthru
      _
    // Predicated region
    $region18: #{tpu_custom_call.1} parent=1 // pred_check
      _
    $region19: #{tpu_custom_call.1} parent=1 // pred_check_branch
      %41 = sbr.rel (0) target = $region21
    $region20: #{tpu_custom_call.1} parent=1 // pred_region
      %42 = dma.done [#allocation7], 512
    $region21: #{tpu_custom_call.1} parent=1 // pred_fallthru
      _
    %s43 = scalar_lea.hbm %s4, 128
    %s45 = sshll.u32 1, 14
    %s46 = sxor.u32 4294967295, %s45
    %s49 = sshll.u32 3, 24
    %s50 = sxor.u32 4294967295, %s49
    %s51 = sand.u32 0, %s50
    %s53 = sor.u32 %s51, 0
    %56 = sst [smem:[#allocation9]] 128
    %s57 = scalar_lea.smem [#allocation9], 1
    %58 = sst [smem:[%s57]] 256
    %s59 = scalar_lea.smem [#allocation9], 2
    %60 = sst [smem:[%s59]] 2
    %62 = dma.general %s3, 64, %s43, [#allocation3], [#allocation8], [#allocation9], %s53, 0
    %s63 = scalar_lea.hbm %s3, 32
    %s64 = scalar_lea.hbm %s4, 160
    %s65 = scalar_lea.sflag [#allocation3], 1
    %s67 = sshll.u32 1, 14
    %s68 = sxor.u32 4294967295, %s67
    %s71 = sshll.u32 3, 24
    %s72 = sxor.u32 4294967295, %s71
    %s73 = sand.u32 0, %s72
    %s75 = sor.u32 %s73, 0
    %78 = sst [smem:[#allocation11]] 128
    %s79 = scalar_lea.smem [#allocation11], 1
    %80 = sst [smem:[%s79]] 256
    %s81 = scalar_lea.smem [#allocation11], 2
    %82 = sst [smem:[%s81]] 2
    %84 = dma.general %s63, 64, %s64, %s65, [#allocation10], [#allocation11], %s75, 0
    %s85 = scalar_lea.hbm %s3, 64
    %s86 = scalar_lea.hbm %s4, 192
    %s87 = scalar_lea.sflag [#allocation3], 2
    %s89 = sshll.u32 1, 14
    %s90 = sxor.u32 4294967295, %s89
    %s93 = sshll.u32 3, 24
    %s94 = sxor.u32 4294967295, %s93
    %s95 = sand.u32 0, %s94
    %s97 = sor.u32 %s95, 0
    %100 = sst [smem:[#allocation13]] 128
    %s101 = scalar_lea.smem [#allocation13], 1
    %102 = sst [smem:[%s101]] 256
    %s103 = scalar_lea.smem [#allocation13], 2
    %104 = sst [smem:[%s103]] 2
    %106 = dma.general %s85, 64, %s86, %s87, [#allocation12], [#allocation13], %s97, 0
    %s107 = scalar_lea.hbm %s3, 96
    %s108 = scalar_lea.hbm %s4, 224
    %s109 = scalar_lea.sflag [#allocation3], 3
    %s111 = sshll.u32 1, 14
    %s112 = sxor.u32 4294967295, %s111
    %s115 = sshll.u32 3, 24
    %s116 = sxor.u32 4294967295, %s115
    %s117 = sand.u32 0, %s116
    %s119 = sor.u32 %s117, 0
    %122 = sst [smem:[#allocation15]] 128
    %s123 = scalar_lea.smem [#allocation15], 1
    %124 = sst [smem:[%s123]] 256
    %s125 = scalar_lea.smem [#allocation15], 2
    %126 = sst [smem:[%s125]] 2
    %128 = dma.general %s107, 64, %s108, %s109, [#allocation14], [#allocation15], %s119, 0
    %v129 = vld [vmem:[#allocation4] sm:$0xff]
    %v130 = vld [vmem:[#allocation4 + $0x8] sm:$0xff]
    %v131 = vld [vmem:[#allocation6] sm:$0xff]
    %v132 = vld [vmem:[#allocation6 + $0x8] sm:$0xff]
    %v133 = vld [vmem:[#allocation6 + $0x10] sm:$0xff]
    %v134 = vld [vmem:[#allocation6 + $0x18] sm:$0xff]
    %v135 = vld [vmem:[%s2] sm:$0x1]
    %v137 = vlaneseq
    %v138 = vshrl.u32 %v137, 7
    %v139 = vsub.s32 0, %v138
    %v140 = vrot.slane %v135, %v139
    %vm142 = vcmask 261120
    %v144 = vsel %vm142, %v129, 0
    %v147 = vsel %vm142, %v130, 0
    %149 = vmatprep.subr.mxu0 0.0
    %150 = vmatpush1.msra.mxu0 %v131
    %151 = vmatprep.subr.mxu0 0.0
    %152 = vmatpush1.msra.mxu0 %v132
    %153 = vmatprep.subr.mxu0 0.0
    %154 = vmatpush1.msra.mxu0 %v133
    %155 = vmatprep.subr.mxu0 0.0
    %156 = vmatpush1.msra.mxu0 %v134
    %157 = vmatprep.subr.mxu0 0.0
    %158 = vmatpush1.msra.mxu0 0.0
    %159 = vmatprep.subr.mxu0 0.0
    %160 = vmatpush1.msra.mxu0 0.0
    %161 = vmatprep.subr.mxu0 0.0
    %162 = vmatpush1.msra.mxu0 0.0
    %163 = vmatprep.subr.mxu0 0.0
    %164 = vmatpush1.msra.mxu0 0.0
    %165 = vmatprep.subr.mxu0 0.0
    %166 = vmatpush1.msra.mxu0 0.0
    %167 = vmatprep.subr.mxu0 0.0
    %168 = vmatpush1.msra.mxu0 0.0
    %169 = vmatprep.subr.mxu0 0.0
    %170 = vmatpush1.msra.mxu0 0.0
    %171 = vmatprep.subr.mxu0 0.0
    %172 = vmatpush1.msra.mxu0 0.0
    %173 = vmatprep.subr.mxu0 0.0
    %174 = vmatpush1.msra.mxu0 0.0
    %175 = vmatprep.subr.mxu0 0.0
    %176 = vmatpush1.msra.mxu0 0.0
    %177 = vmatprep.subr.mxu0 0.0
    %178 = vmatpush1.msra.mxu0 0.0
    %179 = vmatprep.subr.mxu0 0.0
    %180 = vmatpush1.msra.mxu0 0.0
    %181 = vmatprep.subr.mxu0 0.0
    %182 = vmatpush1.msra.mxu0 0.0
    %183 = vmatprep.subr.mxu0 0.0
    %184 = vmatpush1.msra.mxu0 0.0
    %185 = vmatprep.subr.mxu0 0.0
    %186 = vmatpush1.msra.mxu0 0.0
    %187 = vmatprep.subr.mxu0 0.0
    %188 = vmatpush1.msra.mxu0 0.0
    %189 = vmatprep.subr.mxu0 0.0
    %190 = vmatpush1.msra.mxu0 0.0
    %191 = vmatprep.subr.mxu0 0.0
    %192 = vmatpush1.msra.mxu0 0.0
    %193 = vmatprep.subr.mxu0 0.0
    %194 = vmatpush1.msra.mxu0 0.0
    %195 = vmatprep.subr.mxu0 0.0
    %196 = vmatpush1.msra.mxu0 0.0
    %197 = vmatprep.subr.mxu0 0.0
    %198 = vmatpush1.msra.mxu0 0.0
    %199 = vmatprep.subr.mxu0 0.0
    %200 = vmatpush1.msra.mxu0 0.0
    %201 = vmatprep.subr.mxu0 0.0
    %202 = vmatpush1.msra.mxu0 0.0
    %203 = vmatprep.subr.mxu0 0.0
    %204 = vmatpush1.msra.mxu0 0.0
    %205 = vmatprep.subr.mxu0 0.0
    %206 = vmatpush1.msra.mxu0 0.0
    %207 = vmatprep.subr.mxu0 0.0
    %208 = vmatpush1.msra.mxu0 0.0
    %209 = vmatprep.subr.mxu0 0.0
    %210 = vmatpush1.msra.mxu0 0.0
    %211 = vmatprep.subr.mxu0 0.0
    %212 = vmatpush1.msra.mxu0 0.0
    %213 = vmatprep.mubr.f32.mxu0 0.0
    %214 = vmatmul.mubr.f32.gmra.mrb[0].mxu0 %v144
    %v215 = vpop.f32.mrb[0].mxu0
    %v216 = vadd.f32 %v140, %v215
    %v217 = vpop.f32.mrb[0].mxu0
    %218 = vmatprep.mubr.f32.mxu0 0.0
    %219 = vmatmul.mubr.f32.gmra.mrb[0].mxu0 %v147
    %v220 = vpop.f32.mrb[0].mxu0
    %v221 = vadd.f32 %v140, %v220
    %v222 = vpop.f32.mrb[0].mxu0
    %223 = vdwg.mxu0
    %224 = vst [vmem:[#allocation2] sm:$0xff] %v216
    %225 = vst [vmem:[#allocation2 + $0x8] sm:$0xff] %v221
    %s226 = scalar_lea.sflag [#allocation3], 4
    %s228 = sshll.u32 [#allocation2], 4
    %s229 = int_to_ptr.vmem [resolvable:$true] %s228
    %231 = dma.vmem_to_hbm [thread:$0]  %s229, 256, %s4, %s226, 128, 256, 8
    %s232 = smul.u32 2, 8
    %s233 = smul.u32 %s232, 1
    %s234 = sshll.u32 %s233, 4
    %235 = dma.done %s226, %s234
    %s236 = smul.u32 2, 2
    %s237 = smul.u32 %s236, 1
    %s238 = sshll.u32 %s237, 4
    %239 = dma.done [#allocation3], %s238
    %s240 = sshll.u32 %s237, 4
    %241 = dma.done %s65, %s240
    %s242 = sshll.u32 %s237, 4
    %243 = dma.done %s87, %s242
    %s244 = sshll.u32 %s237, 4
    %245 = dma.done %s109, %s244
    %246 = vsyncpa [#allocation5], 1
    %247 = vsyncpa [#allocation7], 1
  %248 = vsyncmov [#allocation3]
  %s249 = vpop.sfrf %248
  %p250 = scmp.eq.s32.totalorder %s249, 0
  %p251 = pneg %p250
  %253 = shalt.err (%p251)
  %s254 = scalar_lea.sflag [#allocation3], 1
  %255 = vsyncmov %s254
  %s256 = vpop.sfrf %255
  %p257 = scmp.eq.s32.totalorder %s256, 0
  %p258 = pneg %p257
  %260 = shalt.err (%p258)
  %s261 = scalar_lea.sflag [#allocation3], 2
  %262 = vsyncmov %s261
  %s263 = vpop.sfrf %262
  %p264 = scmp.eq.s32.totalorder %s263, 0
  %p265 = pneg %p264
  %267 = shalt.err (%p265)
  %s268 = scalar_lea.sflag [#allocation3], 3
  %269 = vsyncmov %s268
  %s270 = vpop.sfrf %269
  %p271 = scmp.eq.s32.totalorder %s270, 0
  %p272 = pneg %p271
  %274 = shalt.err (%p272)
  %s275 = scalar_lea.sflag [#allocation3], 4
  %276 = vsyncmov %s275
  %s277 = vpop.sfrf %276
  %p278 = scmp.eq.s32.totalorder %s277, 0
  %p279 = pneg %p278
  %281 = shalt.err (%p279)

</llo_original>
